<compile_context>
chip_gen: v6e
topology: v6e:2x2x1
jax: 0.10.0
libtpu: 0.0.40
codegen_flags: <defaults>
</compile_context>

<pallas_src>
import jax
import jax.numpy as jnp
from jax import lax
from jax.experimental import pallas as pl
from jax.experimental.pallas import tpu as pltpu

# Contract the last axis of both operands: (B, K) x (N, K) -> (B, N), i.e.
# x @ W^T with W in torch's (out, in) layout, done directly on the MXU.
_DNUMS = (((1,), (1,)), ((), ()))


def timestep_embedding_kernel(x_ref, w1_ref, b1_ref, w2_ref, b2_ref, o_ref):
    # linear_1: bf16 x bf16 on the MXU, f32 accumulation; bias + SiLU in f32.
    h = lax.dot_general(x_ref[...].astype(jnp.bfloat16), w1_ref[...],
                        _DNUMS, preferred_element_type=jnp.float32) + b1_ref[...]
    h = h * jax.nn.sigmoid(h)  # SiLU: sigmoid -> EUP slot, mul -> VPU slot
    # linear_2 for this output-row tile of w2 (row-contiguous DMA).
    out = lax.dot_general(h.astype(jnp.bfloat16), w2_ref[...],
                          _DNUMS, preferred_element_type=jnp.float32) + b2_ref[...]
    o_ref[...] = out.astype(o_ref.dtype)


def _pick_tn(H, w2_itemsize, budget_bytes=16 << 20):
    """Pick the output-column tile (= w2 row-tile) size.

    Prefer exactly 2 tiles (even split on v7x's two TensorCores, ~free extra
    step on 1-TC chips); otherwise a single tile. Shrink by halving (keeping a
    multiple of 128) only if a double-buffered w2 tile would exceed the VMEM
    budget.
    """
    if H % 256 == 0:
        tn = H // 2
    else:
        tn = H
    # Shrink if the double-buffered row tile (2 * tn * H * itemsize) is too big.
    while (2 * tn * H * w2_itemsize > budget_bytes
           and tn % 256 == 0):  # keep tn a multiple of 128 after halving
        tn //= 2
    return tn


def timestep_embedding(sample, w1, b1, w2, b2, *, tn=None):
    """sample: (B, C) ; w1: (H, C) bf16 ; b1: (1, H) f32 ;
       w2: (H, H) bf16 ; b2: (1, H) f32  ->  (B, H) in sample.dtype.
       Weights are in torch's native (out_features, in_features) layout."""
    B, K = sample.shape
    H, K_w = w1.shape
    assert K_w == K and w2.shape == (H, H)

    if tn is None:
        tn = _pick_tn(H, jnp.dtype(w2.dtype).itemsize)
    assert H % tn == 0, "H must be divisible by the column tile tn"
    n_tiles = H // tn

    out_itemsize = jnp.dtype(sample.dtype).itemsize
    cost = pl.CostEstimate(
        flops=2 * B * K * H * n_tiles + 2 * B * H * H,
        transcendentals=B * H * n_tiles,
        bytes_accessed=(sample.nbytes + w1.nbytes + b1.nbytes
                        + w2.nbytes + b2.nbytes + B * H * out_itemsize),
    )

    # Residents (same block every step) + double-buffered per-tile working set
    # + headroom, capped below v7x's 64 MiB physical VMEM.
    residents = sample.nbytes + w1.nbytes + b1.nbytes
    per_tile = (tn * H * jnp.dtype(w2.dtype).itemsize
                + tn * jnp.dtype(b2.dtype).itemsize
                + B * tn * out_itemsize)
    vmem_limit = int(min(max(2 * residents + 2 * per_tile + B * H * 4 + (4 << 20),
                             16 << 20),
                         48 << 20))

    return pl.pallas_call(
        timestep_embedding_kernel,
        out_shape=jax.ShapeDtypeStruct((B, H), sample.dtype),
        grid_spec=pltpu.PrefetchScalarGridSpec(
            num_scalar_prefetch=0,
            grid=(n_tiles,),
            in_specs=[
                pl.BlockSpec((B, K), lambda j: (0, 0)),    # x   (same block every step)
                pl.BlockSpec((H, K), lambda j: (0, 0)),    # w1  (same block every step)
                pl.BlockSpec((1, H), lambda j: (0, 0)),    # b1
                pl.BlockSpec((tn, H), lambda j: (j, 0)),   # w2 row tile (contiguous DMA)
                pl.BlockSpec((1, tn), lambda j: (0, j)),   # b2 tile
            ],
            out_specs=pl.BlockSpec((B, tn), lambda j: (0, j)),
        ),
        compiler_params=pltpu.CompilerParams(
            dimension_semantics=("parallel",),   # v7x: each TC streams half of w2
            vmem_limit_bytes=vmem_limit),
        cost_estimate=cost,
    )(sample, w1, b1, w2, b2)


def init_params(key, in_channels, time_embed_dim,
                weight_dtype=jnp.bfloat16, bias_dtype=jnp.float32):
    """Mirror torch.nn.Linear default init (U(-1/sqrt(fan_in), +1/sqrt(fan_in))).
       Weights kept in torch's (out, in) layout; stored bf16 (HBM-BW bound),
       biases kept f32 (negligible bytes)."""
    k1, k2, k3, k4 = jax.random.split(key, 4)
    bound1 = 1.0 / (in_channels ** 0.5)
    bound2 = 1.0 / (time_embed_dim ** 0.5)
    w1 = jax.random.uniform(k1, (time_embed_dim, in_channels), jnp.float32,
                            -bound1, bound1).astype(weight_dtype)
    b1 = jax.random.uniform(k2, (1, time_embed_dim), jnp.float32,
                            -bound1, bound1).astype(bias_dtype)
    w2 = jax.random.uniform(k3, (time_embed_dim, time_embed_dim), jnp.float32,
                            -bound2, bound2).astype(weight_dtype)
    b2 = jax.random.uniform(k4, (1, time_embed_dim), jnp.float32,
                            -bound2, bound2).astype(bias_dtype)
    return w1, b1, w2, b2


if __name__ == "__main__":
    key = jax.random.PRNGKey(0)
    k_x, k_p = jax.random.split(key)

    batch = 8              # multiple of 8 (full sublanes)
    in_channels = 128
    time_embed_dim = 256   # multiple of 128 (lane-dense output stores)

    sample = jax.random.normal(k_x, (batch, in_channels), jnp.float32)
    w1, b1, w2, b2 = init_params(k_p, in_channels, time_embed_dim)

    # Default heuristic picks tn = H/2 = 128 -> grid=(2,): exercises the
    # tiled / pipelined / parallel path.
    out = timestep_embedding(sample, w1, b1, w2, b2)
    out = jax.block_until_ready(out)

    # Precision-matched reference (bf16 weights in (out, in) layout, f32
    # accumulation, f32 SiLU).
    h = lax.dot_general(sample.astype(jnp.bfloat16), w1, _DNUMS,
                        preferred_element_type=jnp.float32) + b1
    h = h * jax.nn.sigmoid(h)
    ref = lax.dot_general(h.astype(jnp.bfloat16), w2, _DNUMS,
                          preferred_element_type=jnp.float32) + b2

    assert out.shape == (batch, time_embed_dim)
    assert jnp.allclose(out, ref.astype(out.dtype), atol=2e-2, rtol=2e-2), (
        float(jnp.max(jnp.abs(out - ref.astype(out.dtype)))))
    print("KERNEL_OK")
</pallas_src>

<mosaic_0001>
module attributes {stable_mosaic.version = 11 : i64} {
  func.func @timestep_embedding_kernel(%arg0: i32, %arg1: memref<8x128xf32, #tpu.memory_space<vmem>>, %arg2: memref<256x128xbf16, #tpu.memory_space<vmem>>, %arg3: memref<1x256xf32, #tpu.memory_space<vmem>>, %arg4: memref<128x256xbf16, #tpu.memory_space<vmem>>, %arg5: memref<1x128xf32, #tpu.memory_space<vmem>>, %arg6: memref<8x128xf32, #tpu.memory_space<vmem>>) attributes {dimension_semantics = [#tpu.dimension_semantics<parallel>], iteration_bounds = array<i64: 2>, scalar_prefetch = 0 : i64, scratch_operands = 0 : i64, tpu.core_type = #tpu.core_type<tc>, window_params = [{pipeline_mode = #tpu.pipeline_mode<synchronous>, transform_indices = @transform_0, window_bounds = array<i64: 8, 128>}, {pipeline_mode = #tpu.pipeline_mode<synchronous>, transform_indices = @transform_1, window_bounds = array<i64: 256, 128>}, {pipeline_mode = #tpu.pipeline_mode<synchronous>, transform_indices = @transform_2, window_bounds = array<i64: 1, 256>}, {transform_indices = @transform_3, window_bounds = array<i64: 128, 256>}, {transform_indices = @transform_4, window_bounds = array<i64: 1, 128>}, {transform_indices = @transform_5, window_bounds = array<i64: 8, 128>}]} {
    %c0 = arith.constant 0 : index
    %c0_0 = arith.constant 0 : index
    %0 = vector.load %arg1[%c0, %c0_0] : memref<8x128xf32, #tpu.memory_space<vmem>>, vector<8x128xf32>
    %1 = arith.truncf %0 : vector<8x128xf32> to vector<8x128xbf16>
    %c0_1 = arith.constant 0 : index
    %c0_2 = arith.constant 0 : index
    %2 = vector.load %arg2[%c0_1, %c0_2] : memref<256x128xbf16, #tpu.memory_space<vmem>>, vector<256x128xbf16>
    %cst = arith.constant dense<0.000000e+00> : vector<8x256xf32>
    %3 = tpu.matmul %1, %2, %cst {dimension_numbers = #tpu.dot_dimension_numbers<[1], [1], [0], [0], [0, 0, 1, 0], [], []>} : vector<8x128xbf16>, vector<256x128xbf16>, vector<8x256xf32> -> vector<8x256xf32>
    %c0_3 = arith.constant 0 : index
    %c0_4 = arith.constant 0 : index
    %4 = vector.load %arg3[%c0_3, %c0_4] : memref<1x256xf32, #tpu.memory_space<vmem>>, vector<1x256xf32>
    %5 = vector.broadcast %4 : vector<1x256xf32> to vector<8x256xf32>
    %6 = arith.addf %3, %5 : vector<8x256xf32>
    %7 = arith.negf %6 : vector<8x256xf32>
    %8 = math.exp %7 : vector<8x256xf32>
    %cst_5 = arith.constant 1.000000e+00 : f32
    %9 = vector.broadcast %cst_5 : f32 to vector<8x256xf32>
    %10 = arith.addf %9, %8 : vector<8x256xf32>
    %11 = arith.divf %9, %10 : vector<8x256xf32>
    %12 = arith.mulf %6, %11 : vector<8x256xf32>
    %13 = arith.truncf %12 : vector<8x256xf32> to vector<8x256xbf16>
    %c0_6 = arith.constant 0 : index
    %c0_7 = arith.constant 0 : index
    %14 = vector.load %arg4[%c0_6, %c0_7] : memref<128x256xbf16, #tpu.memory_space<vmem>>, vector<128x256xbf16>
    %cst_8 = arith.constant dense<0.000000e+00> : vector<8x128xf32>
    %15 = tpu.matmul %13, %14, %cst_8 {dimension_numbers = #tpu.dot_dimension_numbers<[1], [1], [0], [0], [0, 0, 1, 0], [], []>} : vector<8x256xbf16>, vector<128x256xbf16>, vector<8x128xf32> -> vector<8x128xf32>
    %c0_9 = arith.constant 0 : index
    %c0_10 = arith.constant 0 : index
    %16 = vector.load %arg5[%c0_9, %c0_10] : memref<1x128xf32, #tpu.memory_space<vmem>>, vector<1x128xf32>
    %17 = vector.broadcast %16 : vector<1x128xf32> to vector<8x128xf32>
    %18 = arith.addf %15, %17 : vector<8x128xf32>
    %c0_11 = arith.constant 0 : index
    %c0_12 = arith.constant 0 : index
    %19 = vector.load %arg6[%c0_11, %c0_12] : memref<8x128xf32, #tpu.memory_space<vmem>>, vector<8x128xf32>
    tpu.vector_store %arg6[%c0_11, %c0_12], %18 {strides = array<i32>} : memref<8x128xf32, #tpu.memory_space<vmem>>, vector<8x128xf32>,
    return
  }
  func.func @transform_0(%arg0: i32) -> (i32, i32) {
    %c0_i32 = arith.constant 0 : i32
    %c0_i32_0 = arith.constant 0 : i32
    %c0_i32_1 = arith.constant 0 : i32
    return %c0_i32, %c0_i32_0 : i32, i32
  }
  func.func @transform_1(%arg0: i32) -> (i32, i32) {
    %c0_i32 = arith.constant 0 : i32
    %c0_i32_0 = arith.constant 0 : i32
    %c0_i32_1 = arith.constant 0 : i32
    return %c0_i32, %c0_i32_0 : i32, i32
  }
  func.func @transform_2(%arg0: i32) -> (i32, i32) {
    %c0_i32 = arith.constant 0 : i32
    %c0_i32_0 = arith.constant 0 : i32
    %c0_i32_1 = arith.constant 0 : i32
    return %c0_i32, %c0_i32_0 : i32, i32
  }
  func.func @transform_3(%arg0: i32) -> (i32, i32) {
    %c0_i32 = arith.constant 0 : i32
    %c0_i32_0 = arith.constant 0 : i32
    return %arg0, %c0_i32 : i32, i32
  }
  func.func @transform_4(%arg0: i32) -> (i32, i32) {
    %c0_i32 = arith.constant 0 : i32
    %c0_i32_0 = arith.constant 0 : i32
    return %c0_i32, %arg0 : i32, i32
  }
  func.func @transform_5(%arg0: i32) -> (i32, i32) {
    %c0_i32 = arith.constant 0 : i32
    %c0_i32_0 = arith.constant 0 : i32
    return %c0_i32, %arg0 : i32, i32
  }
}

</mosaic_0001>

<llo_original>
// kernel: tpu_custom_call.1
$region0: #{tpu_custom_call.1}
  #allocation0 [shape = 'u32[]', space=smem, size = 0x4, offset = 0x4, fixed_abs, tag = 'smem constant byte address 0x4 - core index']
  #allocation1 [shape = 'u32[144,128]{1,0:T(1,128)}', space=vmem, size = 0x12000, scoped, tag = 'internal scratch']
  %s0 = inlined_call_operand.hbm [shape: f32[8,128], index: 0, kind: input, shape index: {}]
  %s1 = inlined_call_operand.hbm [shape: bf16[256,128], index: 1, kind: input, shape index: {}]
  %s2 = inlined_call_operand.vmem [shape: f32[1,256], index: 2, kind: input, shape index: {}]
  %s3 = inlined_call_operand.hbm [shape: bf16[256,256], index: 3, kind: input, shape index: {}]
  %s4 = inlined_call_operand.vmem [shape: f32[1,256], index: 4, kind: input, shape index: {}]
  %s5 = inlined_call_operand.hbm [shape: f32[8,256], index: 5, kind: output, shape index: {}]
  %s6 = sld [smem:[#allocation0]]
  $region65: #{tpu_custom_call.1} parent=0
    _
  %s8 = ssub.s32 1, %s6
  %s9 = scalar_select 0, %s8, %s6
  $region1: #{tpu_custom_call.1} parent=0
    #allocation2 [shape = 'u8[4096]{0}', space=vmem, size = 0x1000, scoped, tag = 'input window, operand 0, single buffered']
    #allocation3 [shape = 's32[2]{0}', space=sflag, size = 0x8, scoped, tag = 'scoped memory for tpu_custom_call.1']
    #allocation4 [shape = 's32[2]{0}', space=sflag, size = 0x8, scoped, tag = 'scoped memory for tpu_custom_call.1']
    #allocation5 [shape = 'u8[65536]{0}', space=vmem, size = 0x10000, scoped, tag = 'input window, operand 1, single buffered']
    #allocation6 [shape = 's32[1]{0}', space=sflag, size = 0x4, scoped, tag = 'scoped memory for tpu_custom_call.1']
    #allocation7 [shape = 'u8[131072]{0}', space=vmem, size = 0x20000, scoped, tag = 'input window, operand 3']
    #allocation8 [shape = 'u8[8192]{0}', space=vmem, size = 0x2000, scoped, tag = 'output window, operand 0']
    %10 = vsyncpa [#allocation3], 0
    %11 = vsyncpa [#allocation6], 0
    %12 = vsyncpa [#allocation4], 0
    %s13 = scalar_lea.sflag [#allocation4], 1
    %14 = vsyncpa %s13, 0
    loop: start=0, step=1, limit=4
    $region2: #{tpu_custom_call.1} parent=1 // loop_pre_header
      _
    $region3: #{tpu_custom_call.1} parent=1 // loop_header
      %s16 = sphi 0, %s20
      %p17 = scmp.ge.s32.totalorder %s16, 4
      %s24 = sphi 0, %s24
      %s26 = sphi 0, %s24
      %s27 = sphi 0, %s26
      %s41 = sphi 0, %s27
      %s45 = sphi 0, %s45
      %s47 = sphi 0, %s45
      %s48 = sphi 0, %s47
      %s62 = sphi 0, %s48
      %s66 = sphi 0, %s66
      %s68 = sphi 0, %s66
      %s69 = sphi 0, %s68
      %s83 = sphi 0, %s69
      %s89 = sphi 0, %s91
      %s92 = sphi 0, %s89
      %s93 = sphi 0, %s92
      %s109 = sphi 0, %s93
      %s115 = sphi 0, %s117
      %s118 = sphi 0, %s115
      %s119 = sphi 0, %s118
      %s135 = sphi 0, %s119
      %s141 = sphi 0, %s143
      %s144 = sphi 0, %s141
      %s145 = sphi 0, %s144
      %s161 = sphi 0, %s145
    $region4: #{tpu_custom_call.1} parent=1 // loop_header_branch
      %19 = sbr.rel (%p17) target = $region8
    $region5: #{tpu_custom_call.1} parent=1 // loop_body
      %s21 = ssub.s32 %s16, 1
      %s22 = ssub.s32 %s16, 2
      %s23 = sadd.s32 %s16, 1
      %s25 = sadd.s32 %s24, 1
      %p28 = scmp.eq.s32.totalorder %s16, 1
      %p29 = scmp.ne.s32.totalorder %s24, %s26
      %p30 = scmp.eq.s32.totalorder %s16, 0
      %p31 = por %p29, %p30
      %p32 = scmp.ne.s32.totalorder %s24, %s26
      %p33 = scmp.eq.s32.totalorder %s21, 1
      %p34 = por %p32, %p33
      %p35 = scmp.ne.s32.totalorder %s26, %s27
      %p36 = scmp.eq.s32.totalorder %s21, 0
      %p37 = por %p35, %p36
      %p38 = scmp.ne.s32.totalorder %s26, %s27
      %p39 = scmp.eq.s32.totalorder %s22, 1
      %p40 = por %p38, %p39
      %p42 = scmp.ne.s32.totalorder %s27, %s41
      %p43 = scmp.eq.s32.totalorder %s22, 0
      %p44 = por %p42, %p43
      %s46 = sadd.s32 %s45, 1
      %p49 = scmp.eq.s32.totalorder %s16, 1
      %p50 = scmp.ne.s32.totalorder %s45, %s47
      %p51 = scmp.eq.s32.totalorder %s16, 0
      %p52 = por %p50, %p51
      %p53 = scmp.ne.s32.totalorder %s45, %s47
      %p54 = scmp.eq.s32.totalorder %s21, 1
      %p55 = por %p53, %p54
      %p56 = scmp.ne.s32.totalorder %s47, %s48
      %p57 = scmp.eq.s32.totalorder %s21, 0
      %p58 = por %p56, %p57
      %p59 = scmp.ne.s32.totalorder %s47, %s48
      %p60 = scmp.eq.s32.totalorder %s22, 1
      %p61 = por %p59, %p60
      %p63 = scmp.ne.s32.totalorder %s48, %s62
      %p64 = scmp.eq.s32.totalorder %s22, 0
      %p65 = por %p63, %p64
      %s67 = sadd.s32 %s66, 1
      %p70 = scmp.eq.s32.totalorder %s16, 1
      %p71 = scmp.ne.s32.totalorder %s66, %s68
      %p72 = scmp.eq.s32.totalorder %s16, 0
      %p73 = por %p71, %p72
      %p74 = scmp.ne.s32.totalorder %s66, %s68
      %p75 = scmp.eq.s32.totalorder %s21, 1
      %p76 = por %p74, %p75
      %p77 = scmp.ne.s32.totalorder %s68, %s69
      %p78 = scmp.eq.s32.totalorder %s21, 0
      %p79 = por %p77, %p78
      %p80 = scmp.ne.s32.totalorder %s68, %s69
      %p81 = scmp.eq.s32.totalorder %s22, 1
      %p82 = por %p80, %p81
      %p84 = scmp.ne.s32.totalorder %s69, %s83
      %p85 = scmp.eq.s32.totalorder %s22, 0
      %p86 = por %p84, %p85
      %s87 = ssub.s32 %s16, %s23
      %p88 = scmp.eq.s32.totalorder %s87, 0
      %s90 = sadd.s32 %s89, 1
      %s91 = scalar_select %p88, %s89, %s90
      %p94 = pneg %p88
      %p95 = scmp.eq.s32.totalorder %s16, 1
      %p96 = por %p94, %p95
      %p97 = scmp.ne.s32.totalorder %s89, %s92
      %p98 = scmp.eq.s32.totalorder %s16, 0
      %p99 = por %p97, %p98
      %p100 = scmp.ne.s32.totalorder %s89, %s92
      %p101 = scmp.eq.s32.totalorder %s21, 1
      %p102 = por %p100, %p101
      %p103 = scmp.ne.s32.totalorder %s92, %s93
      %p104 = scmp.eq.s32.totalorder %s21, 0
      %p105 = por %p103, %p104
      %p106 = scmp.ne.s32.totalorder %s92, %s93
      %p107 = scmp.eq.s32.totalorder %s22, 1
      %p108 = por %p106, %p107
      %p110 = scmp.ne.s32.totalorder %s93, %s109
      %p111 = scmp.eq.s32.totalorder %s22, 0
      %p112 = por %p110, %p111
      %s113 = ssub.s32 %s16, %s23
      %p114 = scmp.eq.s32.totalorder %s113, 0
      %s116 = sadd.s32 %s115, 1
      %s117 = scalar_select %p114, %s115, %s116
      %p120 = pneg %p114
      %p121 = scmp.eq.s32.totalorder %s16, 1
      %p122 = por %p120, %p121
      %p123 = scmp.ne.s32.totalorder %s115, %s118
      %p124 = scmp.eq.s32.totalorder %s16, 0
      %p125 = por %p123, %p124
      %p126 = scmp.ne.s32.totalorder %s115, %s118
      %p127 = scmp.eq.s32.totalorder %s21, 1
      %p128 = por %p126, %p127
      %p129 = scmp.ne.s32.totalorder %s118, %s119
      %p130 = scmp.eq.s32.totalorder %s21, 0
      %p131 = por %p129, %p130
      %p132 = scmp.ne.s32.totalorder %s118, %s119
      %p133 = scmp.eq.s32.totalorder %s22, 1
      %p134 = por %p132, %p133
      %p136 = scmp.ne.s32.totalorder %s119, %s135
      %p137 = scmp.eq.s32.totalorder %s22, 0
      %p138 = por %p136, %p137
      %s139 = ssub.s32 %s16, %s23
      %p140 = scmp.eq.s32.totalorder %s139, 0
      %s142 = sadd.s32 %s141, 1
      %s143 = scalar_select %p140, %s141, %s142
      %p146 = pneg %p140
      %p147 = scmp.eq.s32.totalorder %s16, 1
      %p148 = por %p146, %p147
      %p149 = scmp.ne.s32.totalorder %s141, %s144
      %p150 = scmp.eq.s32.totalorder %s16, 0
      %p151 = por %p149, %p150
      %p152 = scmp.ne.s32.totalorder %s141, %s144
      %p153 = scmp.eq.s32.totalorder %s21, 1
      %p154 = por %p152, %p153
      %p155 = scmp.ne.s32.totalorder %s144, %s145
      %p156 = scmp.eq.s32.totalorder %s21, 0
      %p157 = por %p155, %p156
      %p158 = scmp.ne.s32.totalorder %s144, %s145
      %p159 = scmp.eq.s32.totalorder %s22, 1
      %p160 = por %p158, %p159
      %p162 = scmp.ne.s32.totalorder %s145, %s161
      %p163 = scmp.eq.s32.totalorder %s22, 0
      %p164 = por %p162, %p163
      %p165 = scmp.le.s32.totalorder 1, %s16
      %p166 = scmp.lt.s32.totalorder %s16, 3
      %p167 = pnand %p165, %p166
      %p168 = pneg %p167
      // Predicated region
      $region9: #{tpu_custom_call.1} parent=5 // pred_check
        _
      $region10: #{tpu_custom_call.1} parent=5 // pred_check_branch
        %170 = sbr.rel (%p167) target = $region12
      $region11: #{tpu_custom_call.1} parent=5 // pred_region
        %s171 = ssub.s32 %s16, 1
        // Predicated region
        $region13: #{tpu_custom_call.1} parent=11 // pred_check
          %p172 = pneg %p37
        $region14: #{tpu_custom_call.1} parent=11 // pred_check_branch
          %174 = sbr.rel (%p172) target = $region16
        $region15: #{tpu_custom_call.1} parent=11 // pred_region
          %s176 = ssub.s32 128, 128
          %177 = vsyncadd [#allocation3], %s176
          %s179 = sshll.u32 [#allocation2], 4
          %s180 = int_to_ptr.vmem [resolvable:$true] %s179
          %182 = dma.hbm_to_vmem [thread:$0]  %s0, 128, %s180, [#allocation3]
        $region16: #{tpu_custom_call.1} parent=11 // pred_fallthru
          _
        // Predicated region
        $region17: #{tpu_custom_call.1} parent=11 // pred_check
          %p183 = pneg %p58
        $region18: #{tpu_custom_call.1} parent=11 // pred_check_branch
          %185 = sbr.rel (%p183) target = $region20
        $region19: #{tpu_custom_call.1} parent=11 // pred_region
          %s187 = ssub.s32 2048, 2048
          %188 = vsyncadd [#allocation6], %s187
          %s189 = sshll.u32 [#allocation5], 4
          %s190 = int_to_ptr.vmem [resolvable:$true] %s189
          %195 = dma.hbm_to_vmem [thread:$0]  %s1, 2048, %s190, [#allocation6], 64, 64, 4
        $region20: #{tpu_custom_call.1} parent=11 // pred_fallthru
          _
        // Predicated region
        $region21: #{tpu_custom_call.1} parent=11 // pred_check
          %p196 = pneg %p79
        $region22: #{tpu_custom_call.1} parent=11 // pred_check_branch
          %198 = sbr.rel (%p196) target = $region24
        $region23: #{tpu_custom_call.1} parent=11 // pred_region
          _
        $region24: #{tpu_custom_call.1} parent=11 // pred_fallthru
          _
      $region12: #{tpu_custom_call.1} parent=5 // pred_fallthru
        _
      %p199 = scmp.lt.s32.totalorder %s16, 2
      // Predicated region
      $region25: #{tpu_custom_call.1} parent=5 // pred_check
        %p200 = pneg %p199
      $region26: #{tpu_custom_call.1} parent=5 // pred_check_branch
        %202 = sbr.rel (%p200) target = $region28
      $region27: #{tpu_custom_call.1} parent=5 // pred_region
        // Predicated region
        $region29: #{tpu_custom_call.1} parent=27 // pred_check
          %p203 = pneg %p99
        $region30: #{tpu_custom_call.1} parent=27 // pred_check_branch
          %205 = sbr.rel (%p203) target = $region32
        $region31: #{tpu_custom_call.1} parent=27 // pred_region
          %s206 = sand.u32 %s16, 1
          %s207 = scalar_lea.sflag [#allocation3], %s206
          %s208 = sand.u32 %s89, 1
          %s209 = smul.addr %s208, 128
          %s210 = scalar_lea.vmem [#allocation7], %s209
          %s211 = smul.u32 16, %s16
          %s213 = ssub.s32 2048, 2048
          %214 = vsyncadd %s207, %s213
          %s215 = smul.addr %s211, 2
          %s216 = smul.addr %s215, 64
          %s217 = scalar_lea.hbm %s3, %s216
          %s218 = sshll.u32 %s210, 4
          %s219 = int_to_ptr.vmem [resolvable:$true] %s218
          %224 = dma.hbm_to_vmem [thread:$0]  %s217, 2048, %s219, %s207, 128, 128, 8
        $region32: #{tpu_custom_call.1} parent=27 // pred_fallthru
          _
        // Predicated region
        $region33: #{tpu_custom_call.1} parent=27 // pred_check
          %p225 = pneg %p125
        $region34: #{tpu_custom_call.1} parent=27 // pred_check_branch
          %227 = sbr.rel (%p225) target = $region36
        $region35: #{tpu_custom_call.1} parent=27 // pred_region
          %p228 = scmp.lt.s32.totalorder %s16, 1
          %s229 = scalar_select %p228, %s16, 1
          %s230 = scalar_lea.vmem %s4, %s229
        $region36: #{tpu_custom_call.1} parent=27 // pred_fallthru
          _
      $region28: #{tpu_custom_call.1} parent=5 // pred_fallthru
        _
      %p231 = scmp.le.s32.totalorder 1, %s16
      %p232 = scmp.lt.s32.totalorder %s16, 3
      %p233 = pnand %p231, %p232
      %p234 = pneg %p233
      // Predicated region
      $region37: #{tpu_custom_call.1} parent=5 // pred_check
        _
      $region38: #{tpu_custom_call.1} parent=5 // pred_check_branch
        %236 = sbr.rel (%p233) target = $region40
      $region39: #{tpu_custom_call.1} parent=5 // pred_region
        %s237 = ssub.s32 %s16, 1
        // Predicated region
        $region41: #{tpu_custom_call.1} parent=39 // pred_check
          %p238 = pneg %p37
        $region42: #{tpu_custom_call.1} parent=39 // pred_check_branch
          %240 = sbr.rel (%p238) target = $region44
        $region43: #{tpu_custom_call.1} parent=39 // pred_region
          %241 = dma.done [#allocation3], 128
        $region44: #{tpu_custom_call.1} parent=39 // pred_fallthru
          _
        // Predicated region
        $region45: #{tpu_custom_call.1} parent=39 // pred_check
          %p242 = pneg %p58
        $region46: #{tpu_custom_call.1} parent=39 // pred_check_branch
          %244 = sbr.rel (%p242) target = $region48
        $region47: #{tpu_custom_call.1} parent=39 // pred_region
          %245 = dma.done [#allocation6], 2048
        $region48: #{tpu_custom_call.1} parent=39 // pred_fallthru
          _
        %s246 = sand.u32 %s21, 1
        %s247 = scalar_lea.sflag [#allocation3], %s246
        %s248 = sand.u32 %s92, 1
        %s249 = smul.addr %s248, 128
        %s250 = scalar_lea.vmem [#allocation7], %s249
        // Predicated region
        $region49: #{tpu_custom_call.1} parent=39 // pred_check
          %p251 = pneg %p105
        $region50: #{tpu_custom_call.1} parent=39 // pred_check_branch
          %253 = sbr.rel (%p251) target = $region52
        $region51: #{tpu_custom_call.1} parent=39 // pred_region
          %254 = dma.done %s247, 2048
        $region52: #{tpu_custom_call.1} parent=39 // pred_fallthru
          _
        %p255 = pneg %p37
        %p256 = pneg %p34
        %p257 = pneg %p58
        %p258 = pneg %p55
        %p259 = pneg %p79
        %p260 = pneg %p76
        %s261 = sand.u32 %s21, 1
        %s262 = scalar_lea.sflag [#allocation3], %s261
        %s263 = sand.u32 %s92, 1
        %s264 = smul.addr %s263, 128
        %s265 = scalar_lea.vmem [#allocation7], %s264
        %p266 = pneg %p105
        %p267 = pneg %p102
        %p268 = scmp.lt.s32.totalorder %s21, 1
        %s269 = scalar_select %p268, %s21, 1
        %s270 = scalar_lea.vmem %s4, %s269
        %p271 = pneg %p131
        %p272 = pneg %p128
        %p273 = pneg %p157
        %p274 = pneg %p154
        %s275 = sand.u32 %s144, 1
        %s276 = scalar_lea.sflag [#allocation4], %s275
        %s277 = sand.u32 %s144, 1
        %s278 = smul.addr %s277, 8
        %s279 = scalar_lea.vmem [#allocation8], %s278
        %s280 = smul.u32 16, %s21
        %p281 = scmp.lt.s32.totalorder %s21, 1
        %s282 = scalar_select %p281, %s21, 1
        %s283 = scalar_lea.vmem %s4, %s282
        %v285 = vld [vmem:[#allocation2] sm:$0xff]
        %v286 = vpack.c.bf16 %v285, %v285
        %v287 = vld [vmem:[#allocation5] sm:$0xf]
        %v288 = vld [vmem:[#allocation5 + $0x4] sm:$0xf]
        %v289 = vld [vmem:[#allocation5 + $0x8] sm:$0xf]
        %v290 = vld [vmem:[#allocation5 + $0xc] sm:$0xf]
        %v291 = vld [vmem:[#allocation5 + $0x10] sm:$0xf]
        %v292 = vld [vmem:[#allocation5 + $0x14] sm:$0xf]
        %v293 = vld [vmem:[#allocation5 + $0x18] sm:$0xf]
        %v294 = vld [vmem:[#allocation5 + $0x1c] sm:$0xf]
        %v295 = vld [vmem:[#allocation5 + $0x20] sm:$0xf]
        %v296 = vld [vmem:[#allocation5 + $0x24] sm:$0xf]
        %v297 = vld [vmem:[#allocation5 + $0x28] sm:$0xf]
        %v298 = vld [vmem:[#allocation5 + $0x2c] sm:$0xf]
        %v299 = vld [vmem:[#allocation5 + $0x30] sm:$0xf]
        %v300 = vld [vmem:[#allocation5 + $0x34] sm:$0xf]
        %v301 = vld [vmem:[#allocation5 + $0x38] sm:$0xf]
        %v302 = vld [vmem:[#allocation5 + $0x3c] sm:$0xf]
        %v303 = vld [vmem:[#allocation5 + $0x40] sm:$0xf]
        %v304 = vld [vmem:[#allocation5 + $0x44] sm:$0xf]
        %v305 = vld [vmem:[#allocation5 + $0x48] sm:$0xf]
        %v306 = vld [vmem:[#allocation5 + $0x4c] sm:$0xf]
        %v307 = vld [vmem:[#allocation5 + $0x50] sm:$0xf]
        %v308 = vld [vmem:[#allocation5 + $0x54] sm:$0xf]
        %v309 = vld [vmem:[#allocation5 + $0x58] sm:$0xf]
        %v310 = vld [vmem:[#allocation5 + $0x5c] sm:$0xf]
        %v311 = vld [vmem:[#allocation5 + $0x60] sm:$0xf]
        %v312 = vld [vmem:[#allocation5 + $0x64] sm:$0xf]
        %v313 = vld [vmem:[#allocation5 + $0x68] sm:$0xf]
        %v314 = vld [vmem:[#allocation5 + $0x6c] sm:$0xf]
        %v315 = vld [vmem:[#allocation5 + $0x70] sm:$0xf]
        %v316 = vld [vmem:[#allocation5 + $0x74] sm:$0xf]
        %v317 = vld [vmem:[#allocation5 + $0x78] sm:$0xf]
        %v318 = vld [vmem:[#allocation5 + $0x7c] sm:$0xf]
        %v319 = vld [vmem:[%s2] sm:$0x3]
        %v321 = vlaneseq
        %v322 = vshrl.u32 %v321, 7
        %v323 = vsub.s32 0, %v322
        %v324 = vrot.slane %v319, %v323
        %v325 = vlaneseq
        %v326 = vshrl.u32 %v325, 7
        %v327 = vsub.s32 1, %v326
        %v328 = vrot.slane %v319, %v327
        %v363 = vunpack.c.l.b16 %v287
        %v364 = vunpack.c.l.b16 %v288
        %v365 = vunpack.c.l.b16 %v289
        %v366 = vunpack.c.l.b16 %v290
        %v367 = vunpack.c.l.b16 %v291
        %v368 = vunpack.c.l.b16 %v292
        %v369 = vunpack.c.l.b16 %v293
        %v370 = vunpack.c.l.b16 %v294
        %v371 = vunpack.c.l.b16 %v295
        %v372 = vunpack.c.l.b16 %v296
        %v373 = vunpack.c.l.b16 %v297
        %v374 = vunpack.c.l.b16 %v298
        %v375 = vunpack.c.l.b16 %v299
        %v376 = vunpack.c.l.b16 %v300
        %v377 = vunpack.c.l.b16 %v301
        %v378 = vunpack.c.l.b16 %v302
        %v379 = vunpack.c.l.b16 %v303
        %v380 = vunpack.c.l.b16 %v304
        %v381 = vunpack.c.l.b16 %v305
        %v382 = vunpack.c.l.b16 %v306
        %v383 = vunpack.c.l.b16 %v307
        %v384 = vunpack.c.l.b16 %v308
        %v385 = vunpack.c.l.b16 %v309
        %v386 = vunpack.c.l.b16 %v310
        %v387 = vunpack.c.l.b16 %v311
        %v388 = vunpack.c.l.b16 %v312
        %v389 = vunpack.c.l.b16 %v313
        %v390 = vunpack.c.l.b16 %v314
        %v391 = vunpack.c.l.b16 %v315
        %v392 = vunpack.c.l.b16 %v316
        %v393 = vunpack.c.l.b16 %v317
        %v394 = vunpack.c.l.b16 %v318
        %v395 = vpack.c.b16 %v364, %v363
        %v396 = vpack.c.b16 %v366, %v365
        %v397 = vpack.c.b16 %v368, %v367
        %v398 = vpack.c.b16 %v370, %v369
        %v399 = vpack.c.b16 %v372, %v371
        %v400 = vpack.c.b16 %v374, %v373
        %v401 = vpack.c.b16 %v376, %v375
        %v402 = vpack.c.b16 %v378, %v377
        %v403 = vpack.c.b16 %v380, %v379
        %v404 = vpack.c.b16 %v382, %v381
        %v405 = vpack.c.b16 %v384, %v383
        %v406 = vpack.c.b16 %v386, %v385
        %v407 = vpack.c.b16 %v388, %v387
        %v408 = vpack.c.b16 %v390, %v389
        %v409 = vpack.c.b16 %v392, %v391
        %v410 = vpack.c.b16 %v394, %v393
        %427 = vmatprep.subr.bf16.mxu0 0
        %428 = vmatpush1.bf16.xpose.msra.mxu0 %v402
        %429 = vmatprep.subr.bf16.mxu0 0
        %430 = vmatpush1.bf16.xpose.msra.mxu0 %v401
        %431 = vmatprep.subr.bf16.mxu0 0
        %432 = vmatpush1.bf16.xpose.msra.mxu0 %v400
        %433 = vmatprep.subr.bf16.mxu0 0
        %434 = vmatpush1.bf16.xpose.msra.mxu0 %v399
        %435 = vmatprep.subr.bf16.mxu0 0
        %436 = vmatpush1.bf16.xpose.msra.mxu0 %v398
        %437 = vmatprep.subr.bf16.mxu0 0
        %438 = vmatpush1.bf16.xpose.msra.mxu0 %v397
        %439 = vmatprep.subr.bf16.mxu0 0
        %440 = vmatpush1.bf16.xpose.msra.mxu0 %v396
        %441 = vmatprep.subr.bf16.mxu0 0
        %442 = vmatpush1.bf16.xpose.msra.mxu0 %v395
        %443 = vmatprep.subr.bf16.mxu0 0
        %444 = vmatpush2.bf16.xpose.msra.mxu0 %v410
        %445 = vmatprep.subr.bf16.mxu0 0
        %446 = vmatpush2.bf16.xpose.msra.mxu0 %v409
        %447 = vmatprep.subr.bf16.mxu0 0
        %448 = vmatpush2.bf16.xpose.msra.mxu0 %v408
        %449 = vmatprep.subr.bf16.mxu0 0
        %450 = vmatpush2.bf16.xpose.msra.mxu0 %v407
        %451 = vmatprep.subr.bf16.mxu0 0
        %452 = vmatpush2.bf16.xpose.msra.mxu0 %v406
        %453 = vmatprep.subr.bf16.mxu0 0
        %454 = vmatpush2.bf16.xpose.msra.mxu0 %v405
        %455 = vmatprep.subr.bf16.mxu0 0
        %456 = vmatpush2.bf16.xpose.msra.mxu0 %v404
        %457 = vmatprep.subr.bf16.mxu0 0
        %458 = vmatpush2.bf16.xpose.msra.mxu0 %v403
        %459 = vmatprep.mubr.bf16.mxu0 0
        %460 = vmatmul.mubr.bf16.gmra.mxu0 %v286
        %v461 = vpop.f32.mrf.mxu0
        %v462 = vadd.f32 %v324, %v461
        %v463 = vpop.f32.mrf.mxu0
        %v464 = vadd.f32 %v328, %v463
        %v465 = vpop.f32.mrf.mxu0
        %v466 = vpop.f32.mrf.mxu0
        %467 = vdwg.mxu0
        %v468 = vxor.u32 %v462, 2147483648
        %v469 = vxor.u32 %v464, 2147483648
        %v470 = vmul.f32 %v468, 1.442695
        %v471 = vpow.pop %v470
        %v472 = vmul.f32 %v469, 1.442695
        %v473 = vpow.pop %v472
        %v474 = vadd.f32 %v471, 1.0
        %v475 = vadd.f32 %v473, 1.0
        %v476 = vrcp.pop %v474
        %v477 = vmul.f32 1.0, %v476
        %v478 = vrcp.pop %v475
        %v479 = vmul.f32 1.0, %v478
        %v480 = vmul.f32 %v462, %v477
        %v481 = vmul.f32 %v464, %v479
        %v482 = vpack.c.bf16 %v480, %v480
        %v483 = vpack.c.bf16 %v481, %v481
        %v484 = vld [vmem:[%s250] sm:$0xff]
        %v485 = vld [vmem:[%s250 + $0x8] sm:$0xff]
        %v486 = vld [vmem:[%s250 + $0x10] sm:$0xff]
        %v487 = vld [vmem:[%s250 + $0x18] sm:$0xff]
        %v488 = vld [vmem:[%s250 + $0x20] sm:$0xff]
        %v489 = vld [vmem:[%s250 + $0x28] sm:$0xff]
        %v490 = vld [vmem:[%s250 + $0x30] sm:$0xff]
        %v491 = vld [vmem:[%s250 + $0x38] sm:$0xff]
        %v492 = vld [vmem:[%s250 + $0x40] sm:$0xff]
        %v493 = vld [vmem:[%s250 + $0x48] sm:$0xff]
        %v494 = vld [vmem:[%s250 + $0x50] sm:$0xff]
        %v495 = vld [vmem:[%s250 + $0x58] sm:$0xff]
        %v496 = vld [vmem:[%s250 + $0x60] sm:$0xff]
        %v497 = vld [vmem:[%s250 + $0x68] sm:$0xff]
        %v498 = vld [vmem:[%s250 + $0x70] sm:$0xff]
        %v499 = vld [vmem:[%s250 + $0x78] sm:$0xff]
        %v500 = vld [vmem:[%s283] sm:$0x1]
        %v502 = vlaneseq
        %v503 = vshrl.u32 %v502, 7
        %v504 = vsub.s32 0, %v503
        %v505 = vrot.slane %v500, %v504
        %v523 = vunpack.c.l.b16 %v484
        %v524 = vunpack.c.h.b16 %v484
        %v525 = vunpack.c.l.b16 %v485
        %v526 = vunpack.c.h.b16 %v485
        %v527 = vunpack.c.l.b16 %v486
        %v528 = vunpack.c.h.b16 %v486
        %v529 = vunpack.c.l.b16 %v487
        %v530 = vunpack.c.h.b16 %v487
        %v531 = vunpack.c.l.b16 %v488
        %v532 = vunpack.c.h.b16 %v488
        %v533 = vunpack.c.l.b16 %v489
        %v534 = vunpack.c.h.b16 %v489
        %v535 = vunpack.c.l.b16 %v490
        %v536 = vunpack.c.h.b16 %v490
        %v537 = vunpack.c.l.b16 %v491
        %v538 = vunpack.c.h.b16 %v491
        %v539 = vunpack.c.l.b16 %v492
        %v540 = vunpack.c.h.b16 %v492
        %v541 = vunpack.c.l.b16 %v493
        %v542 = vunpack.c.h.b16 %v493
        %v543 = vunpack.c.l.b16 %v494
        %v544 = vunpack.c.h.b16 %v494
        %v545 = vunpack.c.l.b16 %v495
        %v546 = vunpack.c.h.b16 %v495
        %v547 = vunpack.c.l.b16 %v496
        %v548 = vunpack.c.h.b16 %v496
        %v549 = vunpack.c.l.b16 %v497
        %v550 = vunpack.c.h.b16 %v497
        %v551 = vunpack.c.l.b16 %v498
        %v552 = vunpack.c.h.b16 %v498
        %v553 = vunpack.c.l.b16 %v499
        %v554 = vunpack.c.h.b16 %v499
        %v555 = vpack.c.b16 %v525, %v523
        %v556 = vpack.c.b16 %v526, %v524
        %v557 = vpack.c.b16 %v529, %v527
        %v558 = vpack.c.b16 %v530, %v528
        %v559 = vpack.c.b16 %v533, %v531
        %v560 = vpack.c.b16 %v534, %v532
        %v561 = vpack.c.b16 %v537, %v535
        %v562 = vpack.c.b16 %v538, %v536
        %v563 = vpack.c.b16 %v541, %v539
        %v564 = vpack.c.b16 %v542, %v540
        %v565 = vpack.c.b16 %v545, %v543
        %v566 = vpack.c.b16 %v546, %v544
        %v567 = vpack.c.b16 %v549, %v547
        %v568 = vpack.c.b16 %v550, %v548
        %v569 = vpack.c.b16 %v553, %v551
        %v570 = vpack.c.b16 %v554, %v552
        %587 = vmatprep.subr.bf16.mxu0 %v570
        %588 = vmatpush1.bf16.xpose.msra.mxu0 %v569
        %589 = vmatprep.subr.bf16.mxu0 %v568
        %590 = vmatpush1.bf16.xpose.msra.mxu0 %v567
        %591 = vmatprep.subr.bf16.mxu0 %v566
        %592 = vmatpush1.bf16.xpose.msra.mxu0 %v565
        %593 = vmatprep.subr.bf16.mxu0 %v564
        %594 = vmatpush1.bf16.xpose.msra.mxu0 %v563
        %595 = vmatprep.subr.bf16.mxu0 %v562
        %596 = vmatpush1.bf16.xpose.msra.mxu0 %v561
        %597 = vmatprep.subr.bf16.mxu0 %v560
        %598 = vmatpush1.bf16.xpose.msra.mxu0 %v559
        %599 = vmatprep.subr.bf16.mxu0 %v558
        %600 = vmatpush1.bf16.xpose.msra.mxu0 %v557
        %601 = vmatprep.subr.bf16.mxu0 %v556
        %602 = vmatpush1.bf16.xpose.msra.mxu0 %v555
        %603 = vmatprep.subr.bf16.mxu0 0
        %604 = vmatpush2.bf16.xpose.msra.mxu0 0
        %605 = vmatprep.subr.bf16.mxu0 0
        %606 = vmatpush2.bf16.xpose.msra.mxu0 0
        %607 = vmatprep.subr.bf16.mxu0 0
        %608 = vmatpush2.bf16.xpose.msra.mxu0 0
        %609 = vmatprep.subr.bf16.mxu0 0
        %610 = vmatpush2.bf16.xpose.msra.mxu0 0
        %611 = vmatprep.subr.bf16.mxu0 0
        %612 = vmatpush2.bf16.xpose.msra.mxu0 0
        %613 = vmatprep.subr.bf16.mxu0 0
        %614 = vmatpush2.bf16.xpose.msra.mxu0 0
        %615 = vmatprep.subr.bf16.mxu0 0
        %616 = vmatpush2.bf16.xpose.msra.mxu0 0
        %617 = vmatprep.subr.bf16.mxu0 0
        %618 = vmatpush2.bf16.xpose.msra.mxu0 0
        %619 = vmatprep.mubr.bf16.mxu0 %v483
        %620 = vmatmul.mubr.bf16.gmra.mxu0 %v482
        %v621 = vpop.f32.mrf.mxu0
        %v622 = vadd.f32 %v505, %v621
        %v623 = vpop.f32.mrf.mxu0
        %v624 = vpop.f32.mrf.mxu0
        %v625 = vpop.f32.mrf.mxu0
        %626 = vdwg.mxu0
        %627 = vst [vmem:[%s279] sm:$0xff] %v622
        %s628 = sand.u32 %s144, 1
        %s629 = scalar_lea.sflag [#allocation4], %s628
        %s630 = sand.u32 %s144, 1
        %s631 = smul.addr %s630, 8
        %s632 = scalar_lea.vmem [#allocation8], %s631
        // Predicated region
        $region53: #{tpu_custom_call.1} parent=39 // pred_check
          %p633 = pneg %p154
        $region54: #{tpu_custom_call.1} parent=39 // pred_check_branch
          %635 = sbr.rel (%p633) target = $region56
        $region55: #{tpu_custom_call.1} parent=39 // pred_region
          %s637 = ssub.s32 128, 128
          %638 = vsyncadd %s629, %s637
          %s639 = smul.addr %s21, 128
          %s640 = scalar_lea.hbm %s5, %s639
          %s642 = sshll.u32 %s632, 4
          %s643 = int_to_ptr.vmem [resolvable:$true] %s642
          %645 = dma.vmem_to_hbm [thread:$0]  %s643, 128, %s640, %s629
        $region56: #{tpu_custom_call.1} parent=39 // pred_fallthru
          _
      $region40: #{tpu_custom_call.1} parent=5 // pred_fallthru
        _
      %p646 = scmp.le.s32.totalorder 2, %s16
      // Predicated region
      $region57: #{tpu_custom_call.1} parent=5 // pred_check
        %p647 = pneg %p646
      $region58: #{tpu_custom_call.1} parent=5 // pred_check_branch
        %649 = sbr.rel (%p647) target = $region60
      $region59: #{tpu_custom_call.1} parent=5 // pred_region
        %s650 = ssub.s32 %s16, 2
        // Predicated region
        $region61: #{tpu_custom_call.1} parent=59 // pred_check
          %p651 = pneg %p160
        $region62: #{tpu_custom_call.1} parent=59 // pred_check_branch
          %653 = sbr.rel (%p651) target = $region64
        $region63: #{tpu_custom_call.1} parent=59 // pred_region
          %s654 = sand.u32 %s145, 1
          %s655 = scalar_lea.sflag [#allocation4], %s654
          %s656 = sand.u32 %s145, 1
          %s657 = smul.addr %s656, 8
          %s658 = scalar_lea.vmem [#allocation8], %s657
          %659 = dma.done %s655, 128
        $region64: #{tpu_custom_call.1} parent=59 // pred_fallthru
          _
      $region60: #{tpu_custom_call.1} parent=5 // pred_fallthru
        _
    $region6: #{tpu_custom_call.1} parent=1 // loop_footer
      %s20 = sadd.s32 1, %s16
    $region7: #{tpu_custom_call.1} parent=1 // loop_footer_branch
      %15 = sbr.rel target = $region3
    $region8: #{tpu_custom_call.1} parent=1 // loop_exit
      _
    %660 = vsyncpa [#allocation3], 1
    %s661 = scalar_lea.sflag [#allocation3], 1
    %662 = vsyncpa %s661, 1
    %663 = vsyncpa [#allocation6], 1
    %664 = vsyncpa [#allocation4], 1
    %s665 = scalar_lea.sflag [#allocation4], 1
    %666 = vsyncpa %s665, 1

</llo_original>
